<compile_context>
chip_gen: v5e
topology: v5e:2x2
jax: 0.10.0
libtpu: 0.0.40
codegen_flags: <defaults>
</compile_context>

<pallas_src>
import jax
import jax.numpy as jnp
from jax.experimental import pallas as pl
from jax.experimental.pallas import tpu as pltpu


def _double_block_kernel(x_ref, w1_ref, w2_ref, bn_ref, o_ref):
    # x_ref : (Bt, Cin*L)      NCL-flattened input rows
    # w1_ref: (Cin*L, Cout*L)  banded layer-1 conv weight (taps + zero padding folded)
    # w2_ref: (Cout*L, Cout*L) banded layer-2 conv weight
    # bn_ref: (4, Cout*L) f32  rows = [scale1, shift1(+bias1), scale2, shift2(+bias2)]
    # o_ref : (Bt, Cout*L)     NCL-flattened output (lane-dense: Cout*L % 128 == 0)
    s1 = bn_ref[0:1, :]
    h1 = bn_ref[1:2, :]
    s2 = bn_ref[2:3, :]
    h2 = bn_ref[3:4, :]

    # Layer 1: conv (one banded matmul) -> folded eval-mode BN -> ReLU.  f32 epilogue.
    a1 = jnp.dot(x_ref[...], w1_ref[...], preferred_element_type=jnp.float32)
    y1 = jnp.maximum(a1 * s1 + h1, 0.0)

    # Layer 2: the intermediate never leaves vregs/VMEM (no HBM round-trip).
    a2 = jnp.dot(y1.astype(w2_ref.dtype), w2_ref[...],
                 preferred_element_type=jnp.float32)
    y2 = jnp.maximum(a2 * s2 + h2, 0.0)

    o_ref[...] = y2.astype(o_ref.dtype)


def _conv1d_as_banded_matrix(w_oik, L):
    """Fold a kernel_size=3 / padding=1 Conv1d into a block-banded dense matrix.

    w_oik: (Cout, Cin, 3) PyTorch Conv1d weight.  Returns W of shape (Cin*L, Cout*L)
    with W[ci*L + i, co*L + j] = w[co, ci, i - j + 1] when 0 <= i-j+1 < 3, else 0,
    so that (x.reshape(B, Cin*L) @ W).reshape(B, Cout, L) equals the padded conv.
    """
    cout, cin, k = w_oik.shape
    assert k == 3, "DoubleBlock uses kernel_size=3, padding=1"
    i = jnp.arange(L)[:, None]                      # input position
    j = jnp.arange(L)[None, :]                      # output position
    t = i - j + 1                                   # tap index (padding=1)
    valid = (t >= 0) & (t < k)                      # zero padding at sequence ends
    taps = jnp.transpose(w_oik, (2, 1, 0))          # (3, Cin, Cout)
    band = taps[jnp.clip(t, 0, k - 1)]              # (L_in, L_out, Cin, Cout)
    band = band * valid[:, :, None, None].astype(w_oik.dtype)
    w_big = jnp.transpose(band, (2, 0, 3, 1))       # (Cin, L_in, Cout, L_out)
    return w_big.reshape(cin * L, cout * L)


def _pick_batch_tile(B):
    """Batch rows (matmul M) per grid step.

    Per perf review: prefer ONE fat step -- each grid step costs ~0.35us of fixed
    overhead and v5e/v6e have a single TensorCore, so splitting a small batch is
    pure overhead.  Only tile when B is large enough that every step still carries
    >= 256 MXU rows, so v7x's two TensorCores / the DMA pipeline actually benefit.
    """
    if B < 512:
        return B
    for bt in range(min(B // 2, 1024), 255, -1):
        if B % bt == 0 and bt % 8 == 0:             # keep block rows sublane-aligned
            return bt
    return B


def double_block_forward(x_ncl, p, compute_dtype=jnp.float32):
    """Fused (Conv1d(k=3,pad=1) -> BatchNorm1d(eval) -> ReLU) * 2.

    x_ncl: (B, Cin, L) in the PyTorch NCL layout.  Returns (B, Cout, L).
    compute_dtype: matmul-operand dtype.  jnp.bfloat16 on v6e/v7x halves operand
    VMEM/bandwidth (accumulation + BN/ReLU stay f32); keep f32 on v5e or when
    bit-accuracy vs an f32 reference matters.
    """
    B, Cin, L = x_ncl.shape
    Cout = p["w1"].shape[0]

    if Cin * L > 1024 or Cout * L > 1024:
        # TODO(synk): long-sequence path (L-tiled, 2-row halo, per-tap matmuls)
        # instead of the O((L*C)^2) banded weight.
        raise NotImplementedError("banded-conv InConv kernel is sized for short L")

    # Host-side folding: conv taps + zero padding -> banded matrices; conv bias ->
    # BN shift; per-channel BN vectors tiled onto the flat Cout*L lane axis and
    # stacked into a single operand.
    w1_big = _conv1d_as_banded_matrix(p["w1"], L).astype(compute_dtype)
    w2_big = _conv1d_as_banded_matrix(p["w2"], L).astype(compute_dtype)
    bn = jnp.stack([
        jnp.repeat(p["scale1"], L),
        jnp.repeat(p["b1"] * p["scale1"] + p["shift1"], L),
        jnp.repeat(p["scale2"], L),
        jnp.repeat(p["b2"] * p["scale2"] + p["shift2"], L),
    ]).astype(jnp.float32)                                    # (4, Cout*L)

    x_flat = x_ncl.reshape(B, Cin * L).astype(compute_dtype)  # free, contiguous

    Bt = _pick_batch_tile(B)
    grid = (B // Bt,)
    K1, N = Cin * L, Cout * L

    out_flat = pl.pallas_call(
        _double_block_kernel,
        out_shape=jax.ShapeDtypeStruct((B, N), x_ncl.dtype),
        grid=grid,
        in_specs=[
            pl.BlockSpec((Bt, K1), lambda b: (b, 0)),
            pl.BlockSpec((K1, N), lambda b: (0, 0)),   # constant block index:
            pl.BlockSpec((N, N), lambda b: (0, 0)),    #   weights fetched once
            pl.BlockSpec((4, N), lambda b: (0, 0)),
        ],
        out_specs=pl.BlockSpec((Bt, N), lambda b: (b, 0)),
        compiler_params=pltpu.CompilerParams(dimension_semantics=("parallel",)),
    )(x_flat, w1_big, w2_big, bn)

    return out_flat.reshape(B, Cout, L)                # free reshape back to NCL


def in_conv_forward(x_ncl, p, compute_dtype=jnp.float32):
    """InConv forward.  x_ncl: (B, Cin, L) NCL (PyTorch layout) -> (B, Cout, L)."""
    return double_block_forward(x_ncl, p, compute_dtype=compute_dtype)


def init_in_conv_params(key, in_ch, out_ch, eps=1e-5):
    """Deterministic parameters mirroring InConv(in_ch, out_ch) shapes (eval-mode BN)."""
    keys = jax.random.split(key, 12)

    def conv_w(k, cin, cout):
        bound = 1.0 / jnp.sqrt(cin * 3.0)
        return jax.random.uniform(k, (cout, cin, 3), jnp.float32, -bound, bound)

    def conv_b(k, cin, cout):
        bound = 1.0 / jnp.sqrt(cin * 3.0)
        return jax.random.uniform(k, (cout,), jnp.float32, -bound, bound)

    def bn_fold(kg, kb, km, kv, cout):
        gamma = jax.random.uniform(kg, (cout,), jnp.float32, 0.5, 1.5)
        beta = 0.1 * jax.random.normal(kb, (cout,), jnp.float32)
        running_mean = 0.1 * jax.random.normal(km, (cout,), jnp.float32)
        running_var = jax.random.uniform(kv, (cout,), jnp.float32, 0.5, 1.5)
        scale = gamma / jnp.sqrt(running_var + eps)
        shift = beta - running_mean * scale
        return scale, shift

    s1, sh1 = bn_fold(keys[4], keys[5], keys[6], keys[7], out_ch)
    s2, sh2 = bn_fold(keys[8], keys[9], keys[10], keys[11], out_ch)
    return {
        "w1": conv_w(keys[0], in_ch, out_ch), "b1": conv_b(keys[1], in_ch, out_ch),
        "scale1": s1, "shift1": sh1,
        "w2": conv_w(keys[2], out_ch, out_ch), "b2": conv_b(keys[3], out_ch, out_ch),
        "scale2": s2, "shift2": sh2,
    }


def in_conv_reference(x_ncl, p):
    """Pure-JAX reference (lax conv) for validation."""
    def cbr(x, w_oik, b, scale, shift):
        y = jax.lax.conv_general_dilated(
            x, w_oik, window_strides=(1,), padding=((1, 1),),
            dimension_numbers=("NCH", "OIH", "NCH"))
        y = (y + b[None, :, None]) * scale[None, :, None] + shift[None, :, None]
        return jnp.maximum(y, 0.0)

    y = cbr(x_ncl, p["w1"], p["b1"], p["scale1"], p["shift1"])
    return cbr(y, p["w2"], p["b2"], p["scale2"], p["shift2"])


if __name__ == "__main__":
    B, IN_CH, OUT_CH, L = 2, 4, 32, 16

    key = jax.random.PRNGKey(0)
    kx, kp = jax.random.split(key)
    x = jax.random.normal(kx, (B, IN_CH, L), jnp.float32)   # NCL input, like PyTorch
    params = init_in_conv_params(kp, IN_CH, OUT_CH)

    out = jax.block_until_ready(in_conv_forward(x, params))
    ref = jax.block_until_ready(in_conv_reference(x, params))

    assert out.shape == (B, OUT_CH, L), out.shape
    assert jnp.allclose(out, ref, atol=1e-4, rtol=1e-4), "f32 mismatch vs reference"

    # bf16 matmul operands (review: v6e/v7x); looser tolerance for the narrower dtype.
    out_bf16 = jax.block_until_ready(
        in_conv_forward(x, params, compute_dtype=jnp.bfloat16))
    assert jnp.allclose(out_bf16, ref, atol=1e-1, rtol=1e-1), "bf16 mismatch vs reference"

    print("KERNEL_OK")
</pallas_src>

<mosaic_0001>
module attributes {stable_mosaic.version = 11 : i64} {
  func.func @_double_block_kernel(%arg0: i32, %arg1: memref<2x64xf32, #tpu.memory_space<vmem>>, %arg2: memref<64x512xf32, #tpu.memory_space<vmem>>, %arg3: memref<512x512xf32, #tpu.memory_space<vmem>>, %arg4: memref<4x512xf32, #tpu.memory_space<vmem>>, %arg5: memref<2x512xf32, #tpu.memory_space<vmem>>) attributes {dimension_semantics = [#tpu.dimension_semantics<parallel>], iteration_bounds = array<i64: 1>, scalar_prefetch = 0 : i64, scratch_operands = 0 : i64, tpu.core_type = #tpu.core_type<tc>, window_params = [{transform_indices = @transform_0, window_bounds = array<i64: 2, 64>}, {pipeline_mode = #tpu.pipeline_mode<synchronous>, transform_indices = @transform_1, window_bounds = array<i64: 64, 512>}, {pipeline_mode = #tpu.pipeline_mode<synchronous>, transform_indices = @transform_2, window_bounds = array<i64: 512, 512>}, {pipeline_mode = #tpu.pipeline_mode<synchronous>, transform_indices = @transform_3, window_bounds = array<i64: 4, 512>}, {transform_indices = @transform_4, window_bounds = array<i64: 2, 512>}]} {
    %c0 = arith.constant 0 : index
    %c0_0 = arith.constant 0 : index
    %0 = vector.load %arg4[%c0, %c0_0] : memref<4x512xf32, #tpu.memory_space<vmem>>, vector<1x512xf32>
    %c1 = arith.constant 1 : index
    %c0_1 = arith.constant 0 : index
    %1 = vector.load %arg4[%c1, %c0_1] : memref<4x512xf32, #tpu.memory_space<vmem>>, vector<1x512xf32>
    %c2 = arith.constant 2 : index
    %c0_2 = arith.constant 0 : index
    %2 = vector.load %arg4[%c2, %c0_2] : memref<4x512xf32, #tpu.memory_space<vmem>>, vector<1x512xf32>
    %c3 = arith.constant 3 : index
    %c0_3 = arith.constant 0 : index
    %3 = vector.load %arg4[%c3, %c0_3] : memref<4x512xf32, #tpu.memory_space<vmem>>, vector<1x512xf32>
    %c0_4 = arith.constant 0 : index
    %c0_5 = arith.constant 0 : index
    %4 = vector.load %arg1[%c0_4, %c0_5] : memref<2x64xf32, #tpu.memory_space<vmem>>, vector<2x64xf32>
    %c0_6 = arith.constant 0 : index
    %c0_7 = arith.constant 0 : index
    %5 = vector.load %arg2[%c0_6, %c0_7] : memref<64x512xf32, #tpu.memory_space<vmem>>, vector<64x512xf32>
    %cst = arith.constant dense<0.000000e+00> : vector<2x512xf32>
    %6 = tpu.matmul %4, %5, %cst {dimension_numbers = #tpu.dot_dimension_numbers<[1], [0], [0], [1], [0, 0, 1, 1], [], []>} : vector<2x64xf32>, vector<64x512xf32>, vector<2x512xf32> -> vector<2x512xf32>
    %7 = vector.broadcast %0 : vector<1x512xf32> to vector<2x512xf32>
    %8 = arith.mulf %6, %7 : vector<2x512xf32>
    %9 = vector.broadcast %1 : vector<1x512xf32> to vector<2x512xf32>
    %10 = arith.addf %8, %9 : vector<2x512xf32>
    %cst_8 = arith.constant 0.000000e+00 : f32
    %11 = vector.broadcast %cst_8 : f32 to vector<2x512xf32>
    %12 = arith.maximumf %10, %11 : vector<2x512xf32>
    %c0_9 = arith.constant 0 : index
    %c0_10 = arith.constant 0 : index
    %13 = vector.load %arg3[%c0_9, %c0_10] : memref<512x512xf32, #tpu.memory_space<vmem>>, vector<512x512xf32>
    %cst_11 = arith.constant dense<0.000000e+00> : vector<2x512xf32>
    %14 = tpu.matmul %12, %13, %cst_11 {dimension_numbers = #tpu.dot_dimension_numbers<[1], [0], [0], [1], [0, 0, 1, 1], [], []>} : vector<2x512xf32>, vector<512x512xf32>, vector<2x512xf32> -> vector<2x512xf32>
    %15 = vector.broadcast %2 : vector<1x512xf32> to vector<2x512xf32>
    %16 = arith.mulf %14, %15 : vector<2x512xf32>
    %17 = vector.broadcast %3 : vector<1x512xf32> to vector<2x512xf32>
    %18 = arith.addf %16, %17 : vector<2x512xf32>
    %cst_12 = arith.constant 0.000000e+00 : f32
    %19 = vector.broadcast %cst_12 : f32 to vector<2x512xf32>
    %20 = arith.maximumf %18, %19 : vector<2x512xf32>
    %c0_13 = arith.constant 0 : index
    %c0_14 = arith.constant 0 : index
    %21 = vector.load %arg5[%c0_13, %c0_14] : memref<2x512xf32, #tpu.memory_space<vmem>>, vector<2x512xf32>
    tpu.vector_store %arg5[%c0_13, %c0_14], %20 {strides = array<i32>} : memref<2x512xf32, #tpu.memory_space<vmem>>, vector<2x512xf32>,
    return
  }
  func.func @transform_0(%arg0: i32) -> (i32, i32) {
    %c0_i32 = arith.constant 0 : i32
    %c0_i32_0 = arith.constant 0 : i32
    return %arg0, %c0_i32 : i32, i32
  }
  func.func @transform_1(%arg0: i32) -> (i32, i32) {
    %c0_i32 = arith.constant 0 : i32
    %c0_i32_0 = arith.constant 0 : i32
    %c0_i32_1 = arith.constant 0 : i32
    return %c0_i32, %c0_i32_0 : i32, i32
  }
  func.func @transform_2(%arg0: i32) -> (i32, i32) {
    %c0_i32 = arith.constant 0 : i32
    %c0_i32_0 = arith.constant 0 : i32
    %c0_i32_1 = arith.constant 0 : i32
    return %c0_i32, %c0_i32_0 : i32, i32
  }
  func.func @transform_3(%arg0: i32) -> (i32, i32) {
    %c0_i32 = arith.constant 0 : i32
    %c0_i32_0 = arith.constant 0 : i32
    %c0_i32_1 = arith.constant 0 : i32
    return %c0_i32, %c0_i32_0 : i32, i32
  }
  func.func @transform_4(%arg0: i32) -> (i32, i32) {
    %c0_i32 = arith.constant 0 : i32
    %c0_i32_0 = arith.constant 0 : i32
    return %arg0, %c0_i32 : i32, i32
  }
}

</mosaic_0001>

<llo_original>
// kernel: tpu_custom_call.1
$region0: #{tpu_custom_call.1}
  #allocation0 [shape = 'u32[]', space=smem, size = 0x4, offset = 0x4, fixed_abs, tag = 'smem constant byte address 0x4 - core index']
  #allocation1 [shape = 'u32[72,128]{1,0:T(1,128)}', space=vmem, size = 0x9000, scoped, tag = 'internal scratch']
  %s0 = inlined_call_operand.hbm [shape: f32[2,64], index: 0, kind: input, shape index: {}]
  %s1 = inlined_call_operand.hbm [shape: f32[64,512], index: 1, kind: input, shape index: {}]
  %s2 = inlined_call_operand.hbm [shape: f32[512,512], index: 2, kind: input, shape index: {}]
  %s3 = inlined_call_operand.hbm [shape: f32[4,512], index: 3, kind: input, shape index: {}]
  %s4 = inlined_call_operand.hbm [shape: f32[2,512], index: 4, kind: output, shape index: {}]
  %s5 = sld [smem:[#allocation0]]
  $region42: #{tpu_custom_call.1} parent=0
    _
  %s7 = ssub.s32 1, %s5
  %s8 = scalar_select 0, %s7, %s5
  $region1: #{tpu_custom_call.1} parent=0
    #allocation2 [shape = 'u8[1024]{0}', space=vmem, size = 0x400, scoped, tag = 'input window, operand 0, single buffered']
    #allocation3 [shape = 's32[1]{0}', space=sflag, size = 0x4, scoped, tag = 'scoped memory for tpu_custom_call.1']
    #allocation4 [shape = 's32[1]{0}', space=sflag, size = 0x4, scoped, tag = 'scoped memory for tpu_custom_call.1']
    #allocation5 [shape = 'u8[131072]{0}', space=vmem, size = 0x20000, scoped, tag = 'input window, operand 1, single buffered']
    #allocation6 [shape = 's32[1]{0}', space=sflag, size = 0x4, scoped, tag = 'scoped memory for tpu_custom_call.1']
    #allocation7 [shape = 'u8[1048576]{0}', space=vmem, size = 0x100000, scoped, tag = 'input window, operand 2, single buffered']
    #allocation8 [shape = 'u8[8192]{0}', space=vmem, size = 0x2000, scoped, tag = 'input window, operand 3, single buffered']
    #allocation9 [shape = 's32[1]{0}', space=sflag, size = 0x4, scoped, tag = 'scoped memory for tpu_custom_call.1']
    #allocation10 [shape = 'u8[4096]{0}', space=vmem, size = 0x1000, scoped, tag = 'output window, operand 0, single buffered']
    %9 = vsyncpa [#allocation3], 0
    %10 = vsyncpa [#allocation6], 0
    %11 = vsyncpa [#allocation9], 0
    %12 = vsyncpa [#allocation4], 0
    // Predicated region
    $region2: #{tpu_custom_call.1} parent=1 // pred_check
      _
    $region3: #{tpu_custom_call.1} parent=1 // pred_check_branch
      %14 = sbr.rel (0) target = $region5
    $region4: #{tpu_custom_call.1} parent=1 // pred_region
      %16 = vsyncadd [#allocation3], 0
      %s18 = sshll.u32 %s0, 4
      %s19 = int_to_ptr.hbm [resolvable:$true] %s18
      %s20 = sshll.u32 [#allocation2], 4
      %s21 = int_to_ptr.vmem [resolvable:$true] %s20
      %23 = dma.hbm_to_vmem [thread:$0]  %s19, 32, %s21, [#allocation3]
    $region5: #{tpu_custom_call.1} parent=1 // pred_fallthru
      _
    // Predicated region
    $region6: #{tpu_custom_call.1} parent=1 // pred_check
      _
    $region7: #{tpu_custom_call.1} parent=1 // pred_check_branch
      %25 = sbr.rel (0) target = $region9
    $region8: #{tpu_custom_call.1} parent=1 // pred_region
      %27 = vsyncadd [#allocation6], 0
      %s28 = sshll.u32 %s1, 4
      %s29 = int_to_ptr.hbm [resolvable:$true] %s28
      %s30 = sshll.u32 [#allocation5], 4
      %s31 = int_to_ptr.vmem [resolvable:$true] %s30
      %36 = dma.hbm_to_vmem [thread:$0]  %s29, 4096, %s31, [#allocation6], 512, 512, 32
    $region9: #{tpu_custom_call.1} parent=1 // pred_fallthru
      _
    // Predicated region
    $region10: #{tpu_custom_call.1} parent=1 // pred_check
      _
    $region11: #{tpu_custom_call.1} parent=1 // pred_check_branch
      %38 = sbr.rel (0) target = $region13
    $region12: #{tpu_custom_call.1} parent=1 // pred_region
      %40 = vsyncadd [#allocation6], 0
      %s41 = sshll.u32 %s2, 4
      %s42 = int_to_ptr.hbm [resolvable:$true] %s41
      %s43 = sshll.u32 [#allocation7], 4
      %s44 = int_to_ptr.vmem [resolvable:$true] %s43
      %49 = dma.hbm_to_vmem [thread:$0]  %s42, 32768, %s44, [#allocation6], 512, 512, 32
    $region13: #{tpu_custom_call.1} parent=1 // pred_fallthru
      _
    // Predicated region
    $region14: #{tpu_custom_call.1} parent=1 // pred_check
      _
    $region15: #{tpu_custom_call.1} parent=1 // pred_check_branch
      %51 = sbr.rel (0) target = $region17
    $region16: #{tpu_custom_call.1} parent=1 // pred_region
      %53 = vsyncadd [#allocation9], 0
      %s55 = sshll.u32 %s3, 4
      %s56 = int_to_ptr.hbm [resolvable:$true] %s55
      %s57 = sshll.u32 [#allocation8], 4
      %s58 = int_to_ptr.vmem [resolvable:$true] %s57
      %60 = dma.hbm_to_vmem [thread:$0]  %s56, 256, %s58, [#allocation9]
    $region17: #{tpu_custom_call.1} parent=1 // pred_fallthru
      _
    // Predicated region
    $region18: #{tpu_custom_call.1} parent=1 // pred_check
      _
    $region19: #{tpu_custom_call.1} parent=1 // pred_check_branch
      %62 = sbr.rel (0) target = $region21
    $region20: #{tpu_custom_call.1} parent=1 // pred_region
      %64 = dma.done [#allocation3], 32
    $region21: #{tpu_custom_call.1} parent=1 // pred_fallthru
      _
    // Predicated region
    $region22: #{tpu_custom_call.1} parent=1 // pred_check
      _
    $region23: #{tpu_custom_call.1} parent=1 // pred_check_branch
      %66 = sbr.rel (0) target = $region25
    $region24: #{tpu_custom_call.1} parent=1 // pred_region
      %68 = dma.done [#allocation6], 4096
    $region25: #{tpu_custom_call.1} parent=1 // pred_fallthru
      _
    // Predicated region
    $region26: #{tpu_custom_call.1} parent=1 // pred_check
      _
    $region27: #{tpu_custom_call.1} parent=1 // pred_check_branch
      %70 = sbr.rel (0) target = $region29
    $region28: #{tpu_custom_call.1} parent=1 // pred_region
      %72 = dma.done [#allocation6], 32768
    $region29: #{tpu_custom_call.1} parent=1 // pred_fallthru
      _
    // Predicated region
    $region30: #{tpu_custom_call.1} parent=1 // pred_check
      _
    $region31: #{tpu_custom_call.1} parent=1 // pred_check_branch
      %74 = sbr.rel (0) target = $region33
    $region32: #{tpu_custom_call.1} parent=1 // pred_region
      %76 = dma.done [#allocation9], 256
    $region33: #{tpu_custom_call.1} parent=1 // pred_fallthru
      _
    %v77 = vld [vmem:[#allocation8] ss:$4 sm:$0xf]
    %s78 = scalar_lea.vmem [#allocation8], 1
    %v79 = vld [vmem:[%s78] ss:$4 sm:$0xf]
    %s80 = scalar_lea.vmem [#allocation8], 2
    %v81 = vld [vmem:[%s80] ss:$4 sm:$0xf]
    %s82 = scalar_lea.vmem [#allocation8], 3
    %v83 = vld [vmem:[%s82] ss:$4 sm:$0xf]
    %v84 = vld [vmem:[#allocation2] sm:$0x3]
    %v85 = vld [vmem:[#allocation5] sm:$0xff]
    %v86 = vld [vmem:[#allocation5 + $0x8] sm:$0xff]
    %v87 = vld [vmem:[#allocation5 + $0x10] sm:$0xff]
    %v88 = vld [vmem:[#allocation5 + $0x18] sm:$0xff]
    %v89 = vld [vmem:[#allocation5 + $0x20] sm:$0xff]
    %v90 = vld [vmem:[#allocation5 + $0x28] sm:$0xff]
    %v91 = vld [vmem:[#allocation5 + $0x30] sm:$0xff]
    %v92 = vld [vmem:[#allocation5 + $0x38] sm:$0xff]
    %v93 = vld [vmem:[#allocation5 + $0x40] sm:$0xff]
    %v94 = vld [vmem:[#allocation5 + $0x48] sm:$0xff]
    %v95 = vld [vmem:[#allocation5 + $0x50] sm:$0xff]
    %v96 = vld [vmem:[#allocation5 + $0x58] sm:$0xff]
    %v97 = vld [vmem:[#allocation5 + $0x60] sm:$0xff]
    %v98 = vld [vmem:[#allocation5 + $0x68] sm:$0xff]
    %v99 = vld [vmem:[#allocation5 + $0x70] sm:$0xff]
    %v100 = vld [vmem:[#allocation5 + $0x78] sm:$0xff]
    %v101 = vld [vmem:[#allocation5 + $0x80] sm:$0xff]
    %v102 = vld [vmem:[#allocation5 + $0x88] sm:$0xff]
    %v103 = vld [vmem:[#allocation5 + $0x90] sm:$0xff]
    %v104 = vld [vmem:[#allocation5 + $0x98] sm:$0xff]
    %v105 = vld [vmem:[#allocation5 + $0xa0] sm:$0xff]
    %v106 = vld [vmem:[#allocation5 + $0xa8] sm:$0xff]
    %v107 = vld [vmem:[#allocation5 + $0xb0] sm:$0xff]
    %v108 = vld [vmem:[#allocation5 + $0xb8] sm:$0xff]
    %v109 = vld [vmem:[#allocation5 + $0xc0] sm:$0xff]
    %v110 = vld [vmem:[#allocation5 + $0xc8] sm:$0xff]
    %v111 = vld [vmem:[#allocation5 + $0xd0] sm:$0xff]
    %v112 = vld [vmem:[#allocation5 + $0xd8] sm:$0xff]
    %v113 = vld [vmem:[#allocation5 + $0xe0] sm:$0xff]
    %v114 = vld [vmem:[#allocation5 + $0xe8] sm:$0xff]
    %v115 = vld [vmem:[#allocation5 + $0xf0] sm:$0xff]
    %v116 = vld [vmem:[#allocation5 + $0xf8] sm:$0xff]
    %vm117 = vcmask 523264
    %v119 = vsel %vm117, %v84, 0
    %121 = vmatpush.msra.mxu0 0.0
    %122 = vmatpush.msra.mxu0 0.0
    %123 = vmatpush.msra.mxu0 0.0
    %124 = vmatpush.msra.mxu0 0.0
    %125 = vmatpush.msra.mxu0 0.0
    %126 = vmatpush.msra.mxu0 0.0
    %127 = vmatpush.msra.mxu0 0.0
    %128 = vmatpush.msra.mxu0 0.0
    %129 = vmatpush.msra.mxu0 %v113
    %130 = vmatpush.msra.mxu0 %v109
    %131 = vmatpush.msra.mxu0 %v105
    %132 = vmatpush.msra.mxu0 %v101
    %133 = vmatpush.msra.mxu0 %v97
    %134 = vmatpush.msra.mxu0 %v93
    %135 = vmatpush.msra.mxu0 %v89
    %136 = vmatpush.msra.mxu0 %v85
    %137 = vmatmul.f32.gmra.mxu0 %v119
    %v138 = vpop.f32.mrf.mxu0
    %v139 = vadd.f32 0.0, %v138
    %140 = vdwg.mxu0
    %141 = vmatpush.msra.mxu0 0.0
    %142 = vmatpush.msra.mxu0 0.0
    %143 = vmatpush.msra.mxu0 0.0
    %144 = vmatpush.msra.mxu0 0.0
    %145 = vmatpush.msra.mxu0 0.0
    %146 = vmatpush.msra.mxu0 0.0
    %147 = vmatpush.msra.mxu0 0.0
    %148 = vmatpush.msra.mxu0 0.0
    %149 = vmatpush.msra.mxu0 %v114
    %150 = vmatpush.msra.mxu0 %v110
    %151 = vmatpush.msra.mxu0 %v106
    %152 = vmatpush.msra.mxu0 %v102
    %153 = vmatpush.msra.mxu0 %v98
    %154 = vmatpush.msra.mxu0 %v94
    %155 = vmatpush.msra.mxu0 %v90
    %156 = vmatpush.msra.mxu0 %v86
    %157 = vmatmul.f32.gmra.mxu0 %v119
    %v158 = vpop.f32.mrf.mxu0
    %v159 = vadd.f32 0.0, %v158
    %160 = vdwg.mxu0
    %161 = vmatpush.msra.mxu0 0.0
    %162 = vmatpush.msra.mxu0 0.0
    %163 = vmatpush.msra.mxu0 0.0
    %164 = vmatpush.msra.mxu0 0.0
    %165 = vmatpush.msra.mxu0 0.0
    %166 = vmatpush.msra.mxu0 0.0
    %167 = vmatpush.msra.mxu0 0.0
    %168 = vmatpush.msra.mxu0 0.0
    %169 = vmatpush.msra.mxu0 %v115
    %170 = vmatpush.msra.mxu0 %v111
    %171 = vmatpush.msra.mxu0 %v107
    %172 = vmatpush.msra.mxu0 %v103
    %173 = vmatpush.msra.mxu0 %v99
    %174 = vmatpush.msra.mxu0 %v95
    %175 = vmatpush.msra.mxu0 %v91
    %176 = vmatpush.msra.mxu0 %v87
    %177 = vmatmul.f32.gmra.mxu0 %v119
    %v178 = vpop.f32.mrf.mxu0
    %v179 = vadd.f32 0.0, %v178
    %180 = vdwg.mxu0
    %181 = vmatpush.msra.mxu0 0.0
    %182 = vmatpush.msra.mxu0 0.0
    %183 = vmatpush.msra.mxu0 0.0
    %184 = vmatpush.msra.mxu0 0.0
    %185 = vmatpush.msra.mxu0 0.0
    %186 = vmatpush.msra.mxu0 0.0
    %187 = vmatpush.msra.mxu0 0.0
    %188 = vmatpush.msra.mxu0 0.0
    %189 = vmatpush.msra.mxu0 %v116
    %190 = vmatpush.msra.mxu0 %v112
    %191 = vmatpush.msra.mxu0 %v108
    %192 = vmatpush.msra.mxu0 %v104
    %193 = vmatpush.msra.mxu0 %v100
    %194 = vmatpush.msra.mxu0 %v96
    %195 = vmatpush.msra.mxu0 %v92
    %196 = vmatpush.msra.mxu0 %v88
    %197 = vmatmul.f32.gmra.mxu0 %v119
    %v198 = vpop.f32.mrf.mxu0
    %v199 = vadd.f32 0.0, %v198
    %200 = vdwg.mxu0
    %v202 = vperm.slane %v77, 0
    %v203 = vperm.slane %v77, 1
    %v204 = vperm.slane %v77, 2
    %v205 = vperm.slane %v77, 3
    %v210 = vmul.f32 %v139, %v202
    %v211 = vmul.f32 %v159, %v203
    %v212 = vmul.f32 %v179, %v204
    %v213 = vmul.f32 %v199, %v205
    %v215 = vperm.slane %v79, 0
    %v216 = vperm.slane %v79, 1
    %v217 = vperm.slane %v79, 2
    %v218 = vperm.slane %v79, 3
    %v223 = vadd.f32 %v210, %v215
    %v224 = vadd.f32 %v211, %v216
    %v225 = vadd.f32 %v212, %v217
    %v226 = vadd.f32 %v213, %v218
    %v227 = vmax.f32 %v223, 0.0
    %v228 = vmax.f32 %v224, 0.0
    %v229 = vmax.f32 %v225, 0.0
    %v230 = vmax.f32 %v226, 0.0
    %v231 = vld [vmem:[#allocation7] sm:$0xff]
    %v232 = vld [vmem:[#allocation7 + $0x8] sm:$0xff]
    %v233 = vld [vmem:[#allocation7 + $0x10] sm:$0xff]
    %v234 = vld [vmem:[#allocation7 + $0x18] sm:$0xff]
    %v235 = vld [vmem:[#allocation7 + $0x20] sm:$0xff]
    %v236 = vld [vmem:[#allocation7 + $0x28] sm:$0xff]
    %v237 = vld [vmem:[#allocation7 + $0x30] sm:$0xff]
    %v238 = vld [vmem:[#allocation7 + $0x38] sm:$0xff]
    %v239 = vld [vmem:[#allocation7 + $0x40] sm:$0xff]
    %v240 = vld [vmem:[#allocation7 + $0x48] sm:$0xff]
    %v241 = vld [vmem:[#allocation7 + $0x50] sm:$0xff]
    %v242 = vld [vmem:[#allocation7 + $0x58] sm:$0xff]
    %v243 = vld [vmem:[#allocation7 + $0x60] sm:$0xff]
    %v244 = vld [vmem:[#allocation7 + $0x68] sm:$0xff]
    %v245 = vld [vmem:[#allocation7 + $0x70] sm:$0xff]
    %v246 = vld [vmem:[#allocation7 + $0x78] sm:$0xff]
    %v247 = vld [vmem:[#allocation7 + $0x80] sm:$0xff]
    %v248 = vld [vmem:[#allocation7 + $0x88] sm:$0xff]
    %v249 = vld [vmem:[#allocation7 + $0x90] sm:$0xff]
    %v250 = vld [vmem:[#allocation7 + $0x98] sm:$0xff]
    %v251 = vld [vmem:[#allocation7 + $0xa0] sm:$0xff]
    %v252 = vld [vmem:[#allocation7 + $0xa8] sm:$0xff]
    %v253 = vld [vmem:[#allocation7 + $0xb0] sm:$0xff]
    %v254 = vld [vmem:[#allocation7 + $0xb8] sm:$0xff]
    %v255 = vld [vmem:[#allocation7 + $0xc0] sm:$0xff]
    %v256 = vld [vmem:[#allocation7 + $0xc8] sm:$0xff]
    %v257 = vld [vmem:[#allocation7 + $0xd0] sm:$0xff]
    %v258 = vld [vmem:[#allocation7 + $0xd8] sm:$0xff]
    %v259 = vld [vmem:[#allocation7 + $0xe0] sm:$0xff]
    %v260 = vld [vmem:[#allocation7 + $0xe8] sm:$0xff]
    %v261 = vld [vmem:[#allocation7 + $0xf0] sm:$0xff]
    %v262 = vld [vmem:[#allocation7 + $0xf8] sm:$0xff]
    %v263 = vld [vmem:[#allocation7 + $0x100] sm:$0xff]
    %v264 = vld [vmem:[#allocation7 + $0x108] sm:$0xff]
    %v265 = vld [vmem:[#allocation7 + $0x110] sm:$0xff]
    %v266 = vld [vmem:[#allocation7 + $0x118] sm:$0xff]
    %v267 = vld [vmem:[#allocation7 + $0x120] sm:$0xff]
    %v268 = vld [vmem:[#allocation7 + $0x128] sm:$0xff]
    %v269 = vld [vmem:[#allocation7 + $0x130] sm:$0xff]
    %v270 = vld [vmem:[#allocation7 + $0x138] sm:$0xff]
    %v271 = vld [vmem:[#allocation7 + $0x140] sm:$0xff]
    %v272 = vld [vmem:[#allocation7 + $0x148] sm:$0xff]
    %v273 = vld [vmem:[#allocation7 + $0x150] sm:$0xff]
    %v274 = vld [vmem:[#allocation7 + $0x158] sm:$0xff]
    %v275 = vld [vmem:[#allocation7 + $0x160] sm:$0xff]
    %v276 = vld [vmem:[#allocation7 + $0x168] sm:$0xff]
    %v277 = vld [vmem:[#allocation7 + $0x170] sm:$0xff]
    %v278 = vld [vmem:[#allocation7 + $0x178] sm:$0xff]
    %v279 = vld [vmem:[#allocation7 + $0x180] sm:$0xff]
    %v280 = vld [vmem:[#allocation7 + $0x188] sm:$0xff]
    %v281 = vld [vmem:[#allocation7 + $0x190] sm:$0xff]
    %v282 = vld [vmem:[#allocation7 + $0x198] sm:$0xff]
    %v283 = vld [vmem:[#allocation7 + $0x1a0] sm:$0xff]
    %v284 = vld [vmem:[#allocation7 + $0x1a8] sm:$0xff]
    %v285 = vld [vmem:[#allocation7 + $0x1b0] sm:$0xff]
    %v286 = vld [vmem:[#allocation7 + $0x1b8] sm:$0xff]
    %v287 = vld [vmem:[#allocation7 + $0x1c0] sm:$0xff]
    %v288 = vld [vmem:[#allocation7 + $0x1c8] sm:$0xff]
    %v289 = vld [vmem:[#allocation7 + $0x1d0] sm:$0xff]
    %v290 = vld [vmem:[#allocation7 + $0x1d8] sm:$0xff]
    %v291 = vld [vmem:[#allocation7 + $0x1e0] sm:$0xff]
    %v292 = vld [vmem:[#allocation7 + $0x1e8] sm:$0xff]
    %v293 = vld [vmem:[#allocation7 + $0x1f0] sm:$0xff]
    %v294 = vld [vmem:[#allocation7 + $0x1f8] sm:$0xff]
    %v295 = vld [vmem:[#allocation7 + $0x200] sm:$0xff]
    %v296 = vld [vmem:[#allocation7 + $0x208] sm:$0xff]
    %v297 = vld [vmem:[#allocation7 + $0x210] sm:$0xff]
    %v298 = vld [vmem:[#allocation7 + $0x218] sm:$0xff]
    %v299 = vld [vmem:[#allocation7 + $0x220] sm:$0xff]
    %v300 = vld [vmem:[#allocation7 + $0x228] sm:$0xff]
    %v301 = vld [vmem:[#allocation7 + $0x230] sm:$0xff]
    %v302 = vld [vmem:[#allocation7 + $0x238] sm:$0xff]
    %v303 = vld [vmem:[#allocation7 + $0x240] sm:$0xff]
    %v304 = vld [vmem:[#allocation7 + $0x248] sm:$0xff]
    %v305 = vld [vmem:[#allocation7 + $0x250] sm:$0xff]
    %v306 = vld [vmem:[#allocation7 + $0x258] sm:$0xff]
    %v307 = vld [vmem:[#allocation7 + $0x260] sm:$0xff]
    %v308 = vld [vmem:[#allocation7 + $0x268] sm:$0xff]
    %v309 = vld [vmem:[#allocation7 + $0x270] sm:$0xff]
    %v310 = vld [vmem:[#allocation7 + $0x278] sm:$0xff]
    %v311 = vld [vmem:[#allocation7 + $0x280] sm:$0xff]
    %v312 = vld [vmem:[#allocation7 + $0x288] sm:$0xff]
    %v313 = vld [vmem:[#allocation7 + $0x290] sm:$0xff]
    %v314 = vld [vmem:[#allocation7 + $0x298] sm:$0xff]
    %v315 = vld [vmem:[#allocation7 + $0x2a0] sm:$0xff]
    %v316 = vld [vmem:[#allocation7 + $0x2a8] sm:$0xff]
    %v317 = vld [vmem:[#allocation7 + $0x2b0] sm:$0xff]
    %v318 = vld [vmem:[#allocation7 + $0x2b8] sm:$0xff]
    %v319 = vld [vmem:[#allocation7 + $0x2c0] sm:$0xff]
    %v320 = vld [vmem:[#allocation7 + $0x2c8] sm:$0xff]
    %v321 = vld [vmem:[#allocation7 + $0x2d0] sm:$0xff]
    %v322 = vld [vmem:[#allocation7 + $0x2d8] sm:$0xff]
    %v323 = vld [vmem:[#allocation7 + $0x2e0] sm:$0xff]
    %v324 = vld [vmem:[#allocation7 + $0x2e8] sm:$0xff]
    %v325 = vld [vmem:[#allocation7 + $0x2f0] sm:$0xff]
    %v326 = vld [vmem:[#allocation7 + $0x2f8] sm:$0xff]
    %v327 = vld [vmem:[#allocation7 + $0x300] sm:$0xff]
    %v328 = vld [vmem:[#allocation7 + $0x308] sm:$0xff]
    %v329 = vld [vmem:[#allocation7 + $0x310] sm:$0xff]
    %v330 = vld [vmem:[#allocation7 + $0x318] sm:$0xff]
    %v331 = vld [vmem:[#allocation7 + $0x320] sm:$0xff]
    %v332 = vld [vmem:[#allocation7 + $0x328] sm:$0xff]
    %v333 = vld [vmem:[#allocation7 + $0x330] sm:$0xff]
    %v334 = vld [vmem:[#allocation7 + $0x338] sm:$0xff]
    %v335 = vld [vmem:[#allocation7 + $0x340] sm:$0xff]
    %v336 = vld [vmem:[#allocation7 + $0x348] sm:$0xff]
    %v337 = vld [vmem:[#allocation7 + $0x350] sm:$0xff]
    %v338 = vld [vmem:[#allocation7 + $0x358] sm:$0xff]
    %v339 = vld [vmem:[#allocation7 + $0x360] sm:$0xff]
    %v340 = vld [vmem:[#allocation7 + $0x368] sm:$0xff]
    %v341 = vld [vmem:[#allocation7 + $0x370] sm:$0xff]
    %v342 = vld [vmem:[#allocation7 + $0x378] sm:$0xff]
    %v343 = vld [vmem:[#allocation7 + $0x380] sm:$0xff]
    %v344 = vld [vmem:[#allocation7 + $0x388] sm:$0xff]
    %v345 = vld [vmem:[#allocation7 + $0x390] sm:$0xff]
    %v346 = vld [vmem:[#allocation7 + $0x398] sm:$0xff]
    %v347 = vld [vmem:[#allocation7 + $0x3a0] sm:$0xff]
    %v348 = vld [vmem:[#allocation7 + $0x3a8] sm:$0xff]
    %v349 = vld [vmem:[#allocation7 + $0x3b0] sm:$0xff]
    %v350 = vld [vmem:[#allocation7 + $0x3b8] sm:$0xff]
    %v351 = vld [vmem:[#allocation7 + $0x3c0] sm:$0xff]
    %v352 = vld [vmem:[#allocation7 + $0x3c8] sm:$0xff]
    %v353 = vld [vmem:[#allocation7 + $0x3d0] sm:$0xff]
    %v354 = vld [vmem:[#allocation7 + $0x3d8] sm:$0xff]
    %v355 = vld [vmem:[#allocation7 + $0x3e0] sm:$0xff]
    %v356 = vld [vmem:[#allocation7 + $0x3e8] sm:$0xff]
    %v357 = vld [vmem:[#allocation7 + $0x3f0] sm:$0xff]
    %v358 = vld [vmem:[#allocation7 + $0x3f8] sm:$0xff]
    %v359 = vld [vmem:[#allocation7 + $0x400] sm:$0xff]
    %v360 = vld [vmem:[#allocation7 + $0x408] sm:$0xff]
    %v361 = vld [vmem:[#allocation7 + $0x410] sm:$0xff]
    %v362 = vld [vmem:[#allocation7 + $0x418] sm:$0xff]
    %v363 = vld [vmem:[#allocation7 + $0x420] sm:$0xff]
    %v364 = vld [vmem:[#allocation7 + $0x428] sm:$0xff]
    %v365 = vld [vmem:[#allocation7 + $0x430] sm:$0xff]
    %v366 = vld [vmem:[#allocation7 + $0x438] sm:$0xff]
    %v367 = vld [vmem:[#allocation7 + $0x440] sm:$0xff]
    %v368 = vld [vmem:[#allocation7 + $0x448] sm:$0xff]
    %v369 = vld [vmem:[#allocation7 + $0x450] sm:$0xff]
    %v370 = vld [vmem:[#allocation7 + $0x458] sm:$0xff]
    %v371 = vld [vmem:[#allocation7 + $0x460] sm:$0xff]
    %v372 = vld [vmem:[#allocation7 + $0x468] sm:$0xff]
    %v373 = vld [vmem:[#allocation7 + $0x470] sm:$0xff]
    %v374 = vld [vmem:[#allocation7 + $0x478] sm:$0xff]
    %v375 = vld [vmem:[#allocation7 + $0x480] sm:$0xff]
    %v376 = vld [vmem:[#allocation7 + $0x488] sm:$0xff]
    %v377 = vld [vmem:[#allocation7 + $0x490] sm:$0xff]
    %v378 = vld [vmem:[#allocation7 + $0x498] sm:$0xff]
    %v379 = vld [vmem:[#allocation7 + $0x4a0] sm:$0xff]
    %v380 = vld [vmem:[#allocation7 + $0x4a8] sm:$0xff]
    %v381 = vld [vmem:[#allocation7 + $0x4b0] sm:$0xff]
    %v382 = vld [vmem:[#allocation7 + $0x4b8] sm:$0xff]
    %v383 = vld [vmem:[#allocation7 + $0x4c0] sm:$0xff]
    %v384 = vld [vmem:[#allocation7 + $0x4c8] sm:$0xff]
    %v385 = vld [vmem:[#allocation7 + $0x4d0] sm:$0xff]
    %v386 = vld [vmem:[#allocation7 + $0x4d8] sm:$0xff]
    %v387 = vld [vmem:[#allocation7 + $0x4e0] sm:$0xff]
    %v388 = vld [vmem:[#allocation7 + $0x4e8] sm:$0xff]
    %v389 = vld [vmem:[#allocation7 + $0x4f0] sm:$0xff]
    %v390 = vld [vmem:[#allocation7 + $0x4f8] sm:$0xff]
    %v391 = vld [vmem:[#allocation7 + $0x500] sm:$0xff]
    %v392 = vld [vmem:[#allocation7 + $0x508] sm:$0xff]
    %v393 = vld [vmem:[#allocation7 + $0x510] sm:$0xff]
    %v394 = vld [vmem:[#allocation7 + $0x518] sm:$0xff]
    %v395 = vld [vmem:[#allocation7 + $0x520] sm:$0xff]
    %v396 = vld [vmem:[#allocation7 + $0x528] sm:$0xff]
    %v397 = vld [vmem:[#allocation7 + $0x530] sm:$0xff]
    %v398 = vld [vmem:[#allocation7 + $0x538] sm:$0xff]
    %v399 = vld [vmem:[#allocation7 + $0x540] sm:$0xff]
    %v400 = vld [vmem:[#allocation7 + $0x548] sm:$0xff]
    %v401 = vld [vmem:[#allocation7 + $0x550] sm:$0xff]
    %v402 = vld [vmem:[#allocation7 + $0x558] sm:$0xff]
    %v403 = vld [vmem:[#allocation7 + $0x560] sm:$0xff]
    %v404 = vld [vmem:[#allocation7 + $0x568] sm:$0xff]
    %v405 = vld [vmem:[#allocation7 + $0x570] sm:$0xff]
    %v406 = vld [vmem:[#allocation7 + $0x578] sm:$0xff]
    %v407 = vld [vmem:[#allocation7 + $0x580] sm:$0xff]
    %v408 = vld [vmem:[#allocation7 + $0x588] sm:$0xff]
    %v409 = vld [vmem:[#allocation7 + $0x590] sm:$0xff]
    %v410 = vld [vmem:[#allocation7 + $0x598] sm:$0xff]
    %v411 = vld [vmem:[#allocation7 + $0x5a0] sm:$0xff]
    %v412 = vld [vmem:[#allocation7 + $0x5a8] sm:$0xff]
    %v413 = vld [vmem:[#allocation7 + $0x5b0] sm:$0xff]
    %v414 = vld [vmem:[#allocation7 + $0x5b8] sm:$0xff]
    %v415 = vld [vmem:[#allocation7 + $0x5c0] sm:$0xff]
    %v416 = vld [vmem:[#allocation7 + $0x5c8] sm:$0xff]
    %v417 = vld [vmem:[#allocation7 + $0x5d0] sm:$0xff]
    %v418 = vld [vmem:[#allocation7 + $0x5d8] sm:$0xff]
    %v419 = vld [vmem:[#allocation7 + $0x5e0] sm:$0xff]
    %v420 = vld [vmem:[#allocation7 + $0x5e8] sm:$0xff]
    %v421 = vld [vmem:[#allocation7 + $0x5f0] sm:$0xff]
    %v422 = vld [vmem:[#allocation7 + $0x5f8] sm:$0xff]
    %v423 = vld [vmem:[#allocation7 + $0x600] sm:$0xff]
    %v424 = vld [vmem:[#allocation7 + $0x608] sm:$0xff]
    %v425 = vld [vmem:[#allocation7 + $0x610] sm:$0xff]
    %v426 = vld [vmem:[#allocation7 + $0x618] sm:$0xff]
    %v427 = vld [vmem:[#allocation7 + $0x620] sm:$0xff]
    %v428 = vld [vmem:[#allocation7 + $0x628] sm:$0xff]
    %v429 = vld [vmem:[#allocation7 + $0x630] sm:$0xff]
    %v430 = vld [vmem:[#allocation7 + $0x638] sm:$0xff]
    %v431 = vld [vmem:[#allocation7 + $0x640] sm:$0xff]
    %v432 = vld [vmem:[#allocation7 + $0x648] sm:$0xff]
    %v433 = vld [vmem:[#allocation7 + $0x650] sm:$0xff]
    %v434 = vld [vmem:[#allocation7 + $0x658] sm:$0xff]
    %v435 = vld [vmem:[#allocation7 + $0x660] sm:$0xff]
    %v436 = vld [vmem:[#allocation7 + $0x668] sm:$0xff]
    %v437 = vld [vmem:[#allocation7 + $0x670] sm:$0xff]
    %v438 = vld [vmem:[#allocation7 + $0x678] sm:$0xff]
    %v439 = vld [vmem:[#allocation7 + $0x680] sm:$0xff]
    %v440 = vld [vmem:[#allocation7 + $0x688] sm:$0xff]
    %v441 = vld [vmem:[#allocation7 + $0x690] sm:$0xff]
    %v442 = vld [vmem:[#allocation7 + $0x698] sm:$0xff]
    %v443 = vld [vmem:[#allocation7 + $0x6a0] sm:$0xff]
    %v444 = vld [vmem:[#allocation7 + $0x6a8] sm:$0xff]
    %v445 = vld [vmem:[#allocation7 + $0x6b0] sm:$0xff]
    %v446 = vld [vmem:[#allocation7 + $0x6b8] sm:$0xff]
    %v447 = vld [vmem:[#allocation7 + $0x6c0] sm:$0xff]
    %v448 = vld [vmem:[#allocation7 + $0x6c8] sm:$0xff]
    %v449 = vld [vmem:[#allocation7 + $0x6d0] sm:$0xff]
    %v450 = vld [vmem:[#allocation7 + $0x6d8] sm:$0xff]
    %v451 = vld [vmem:[#allocation7 + $0x6e0] sm:$0xff]
    %v452 = vld [vmem:[#allocation7 + $0x6e8] sm:$0xff]
    %v453 = vld [vmem:[#allocation7 + $0x6f0] sm:$0xff]
    %v454 = vld [vmem:[#allocation7 + $0x6f8] sm:$0xff]
    %v455 = vld [vmem:[#allocation7 + $0x700] sm:$0xff]
    %v456 = vld [vmem:[#allocation7 + $0x708] sm:$0xff]
    %v457 = vld [vmem:[#allocation7 + $0x710] sm:$0xff]
    %v458 = vld [vmem:[#allocation7 + $0x718] sm:$0xff]
    %v459 = vld [vmem:[#allocation7 + $0x720] sm:$0xff]
    %v460 = vld [vmem:[#allocation7 + $0x728] sm:$0xff]
    %v461 = vld [vmem:[#allocation7 + $0x730] sm:$0xff]
    %v462 = vld [vmem:[#allocation7 + $0x738] sm:$0xff]
    %v463 = vld [vmem:[#allocation7 + $0x740] sm:$0xff]
    %v464 = vld [vmem:[#allocation7 + $0x748] sm:$0xff]
    %v465 = vld [vmem:[#allocation7 + $0x750] sm:$0xff]
    %v466 = vld [vmem:[#allocation7 + $0x758] sm:$0xff]
    %v467 = vld [vmem:[#allocation7 + $0x760] sm:$0xff]
    %v468 = vld [vmem:[#allocation7 + $0x768] sm:$0xff]
    %v469 = vld [vmem:[#allocation7 + $0x770] sm:$0xff]
    %v470 = vld [vmem:[#allocation7 + $0x778] sm:$0xff]
    %v471 = vld [vmem:[#allocation7 + $0x780] sm:$0xff]
    %v472 = vld [vmem:[#allocation7 + $0x788] sm:$0xff]
    %v473 = vld [vmem:[#allocation7 + $0x790] sm:$0xff]
    %v474 = vld [vmem:[#allocation7 + $0x798] sm:$0xff]
    %v475 = vld [vmem:[#allocation7 + $0x7a0] sm:$0xff]
    %v476 = vld [vmem:[#allocation7 + $0x7a8] sm:$0xff]
    %v477 = vld [vmem:[#allocation7 + $0x7b0] sm:$0xff]
    %v478 = vld [vmem:[#allocation7 + $0x7b8] sm:$0xff]
    %v479 = vld [vmem:[#allocation7 + $0x7c0] sm:$0xff]
    %v480 = vld [vmem:[#allocation7 + $0x7c8] sm:$0xff]
    %v481 = vld [vmem:[#allocation7 + $0x7d0] sm:$0xff]
    %v482 = vld [vmem:[#allocation7 + $0x7d8] sm:$0xff]
    %v483 = vld [vmem:[#allocation7 + $0x7e0] sm:$0xff]
    %v484 = vld [vmem:[#allocation7 + $0x7e8] sm:$0xff]
    %v485 = vld [vmem:[#allocation7 + $0x7f0] sm:$0xff]
    %v486 = vld [vmem:[#allocation7 + $0x7f8] sm:$0xff]
    %487 = vmatpush.msra.mxu0 %v291
    %488 = vmatpush.msra.mxu0 %v287
    %489 = vmatpush.msra.mxu0 %v283
    %490 = vmatpush.msra.mxu0 %v279
    %491 = vmatpush.msra.mxu0 %v275
    %492 = vmatpush.msra.mxu0 %v271
    %493 = vmatpush.msra.mxu0 %v267
    %494 = vmatpush.msra.mxu0 %v263
    %495 = vmatpush.msra.mxu0 %v259
    %496 = vmatpush.msra.mxu0 %v255
    %497 = vmatpush.msra.mxu0 %v251
    %498 = vmatpush.msra.mxu0 %v247
    %499 = vmatpush.msra.mxu0 %v243
    %500 = vmatpush.msra.mxu0 %v239
    %501 = vmatpush.msra.mxu0 %v235
    %502 = vmatpush.msra.mxu0 %v231
    %503 = vmatmul.f32.gmra.mxu0 %v227
    %v504 = vpop.f32.mrf.mxu0
    %v505 = vadd.f32 0.0, %v504
    %506 = vdwg.mxu0
    %507 = vmatpush.msra.mxu0 %v355
    %508 = vmatpush.msra.mxu0 %v351
    %509 = vmatpush.msra.mxu0 %v347
    %510 = vmatpush.msra.mxu0 %v343
    %511 = vmatpush.msra.mxu0 %v339
    %512 = vmatpush.msra.mxu0 %v335
    %513 = vmatpush.msra.mxu0 %v331
    %514 = vmatpush.msra.mxu0 %v327
    %515 = vmatpush.msra.mxu0 %v323
    %516 = vmatpush.msra.mxu0 %v319
    %517 = vmatpush.msra.mxu0 %v315
    %518 = vmatpush.msra.mxu0 %v311
    %519 = vmatpush.msra.mxu0 %v307
    %520 = vmatpush.msra.mxu0 %v303
    %521 = vmatpush.msra.mxu0 %v299
    %522 = vmatpush.msra.mxu0 %v295
    %523 = vmatmul.f32.gmra.mxu0 %v228
    %v524 = vpop.f32.mrf.mxu0
    %v525 = vadd.f32 %v505, %v524
    %526 = vdwg.mxu0
    %527 = vmatpush.msra.mxu0 %v419
    %528 = vmatpush.msra.mxu0 %v415
    %529 = vmatpush.msra.mxu0 %v411
    %530 = vmatpush.msra.mxu0 %v407
    %531 = vmatpush.msra.mxu0 %v403
    %532 = vmatpush.msra.mxu0 %v399
    %533 = vmatpush.msra.mxu0 %v395
    %534 = vmatpush.msra.mxu0 %v391
    %535 = vmatpush.msra.mxu0 %v387
    %536 = vmatpush.msra.mxu0 %v383
    %537 = vmatpush.msra.mxu0 %v379
    %538 = vmatpush.msra.mxu0 %v375
    %539 = vmatpush.msra.mxu0 %v371
    %540 = vmatpush.msra.mxu0 %v367
    %541 = vmatpush.msra.mxu0 %v363
    %542 = vmatpush.msra.mxu0 %v359
    %543 = vmatmul.f32.gmra.mxu0 %v229
    %v544 = vpop.f32.mrf.mxu0
    %v545 = vadd.f32 %v525, %v544
    %546 = vdwg.mxu0
    %547 = vmatpush.msra.mxu0 %v483
    %548 = vmatpush.msra.mxu0 %v479
    %549 = vmatpush.msra.mxu0 %v475
    %550 = vmatpush.msra.mxu0 %v471
    %551 = vmatpush.msra.mxu0 %v467
    %552 = vmatpush.msra.mxu0 %v463
    %553 = vmatpush.msra.mxu0 %v459
    %554 = vmatpush.msra.mxu0 %v455
    %555 = vmatpush.msra.mxu0 %v451
    %556 = vmatpush.msra.mxu0 %v447
    %557 = vmatpush.msra.mxu0 %v443
    %558 = vmatpush.msra.mxu0 %v439
    %559 = vmatpush.msra.mxu0 %v435
    %560 = vmatpush.msra.mxu0 %v431
    %561 = vmatpush.msra.mxu0 %v427
    %562 = vmatpush.msra.mxu0 %v423
    %563 = vmatmul.f32.gmra.mxu0 %v230
    %v564 = vpop.f32.mrf.mxu0
    %v565 = vadd.f32 %v545, %v564
    %566 = vdwg.mxu0
    %567 = vmatpush.msra.mxu0 %v292
    %568 = vmatpush.msra.mxu0 %v288
    %569 = vmatpush.msra.mxu0 %v284
    %570 = vmatpush.msra.mxu0 %v280
    %571 = vmatpush.msra.mxu0 %v276
    %572 = vmatpush.msra.mxu0 %v272
    %573 = vmatpush.msra.mxu0 %v268
    %574 = vmatpush.msra.mxu0 %v264
    %575 = vmatpush.msra.mxu0 %v260
    %576 = vmatpush.msra.mxu0 %v256
    %577 = vmatpush.msra.mxu0 %v252
    %578 = vmatpush.msra.mxu0 %v248
    %579 = vmatpush.msra.mxu0 %v244
    %580 = vmatpush.msra.mxu0 %v240
    %581 = vmatpush.msra.mxu0 %v236
    %582 = vmatpush.msra.mxu0 %v232
    %583 = vmatmul.f32.gmra.mxu0 %v227
    %v584 = vpop.f32.mrf.mxu0
    %v585 = vadd.f32 0.0, %v584
    %586 = vdwg.mxu0
    %587 = vmatpush.msra.mxu0 %v356
    %588 = vmatpush.msra.mxu0 %v352
    %589 = vmatpush.msra.mxu0 %v348
    %590 = vmatpush.msra.mxu0 %v344
    %591 = vmatpush.msra.mxu0 %v340
    %592 = vmatpush.msra.mxu0 %v336
    %593 = vmatpush.msra.mxu0 %v332
    %594 = vmatpush.msra.mxu0 %v328
    %595 = vmatpush.msra.mxu0 %v324
    %596 = vmatpush.msra.mxu0 %v320
    %597 = vmatpush.msra.mxu0 %v316
    %598 = vmatpush.msra.mxu0 %v312
    %599 = vmatpush.msra.mxu0 %v308
    %600 = vmatpush.msra.mxu0 %v304
    %601 = vmatpush.msra.mxu0 %v300
    %602 = vmatpush.msra.mxu0 %v296
    %603 = vmatmul.f32.gmra.mxu0 %v228
    %v604 = vpop.f32.mrf.mxu0
    %v605 = vadd.f32 %v585, %v604
    %606 = vdwg.mxu0
    %607 = vmatpush.msra.mxu0 %v420
    %608 = vmatpush.msra.mxu0 %v416
    %609 = vmatpush.msra.mxu0 %v412
    %610 = vmatpush.msra.mxu0 %v408
    %611 = vmatpush.msra.mxu0 %v404
    %612 = vmatpush.msra.mxu0 %v400
    %613 = vmatpush.msra.mxu0 %v396
    %614 = vmatpush.msra.mxu0 %v392
    %615 = vmatpush.msra.mxu0 %v388
    %616 = vmatpush.msra.mxu0 %v384
    %617 = vmatpush.msra.mxu0 %v380
    %618 = vmatpush.msra.mxu0 %v376
    %619 = vmatpush.msra.mxu0 %v372
    %620 = vmatpush.msra.mxu0 %v368
    %621 = vmatpush.msra.mxu0 %v364
    %622 = vmatpush.msra.mxu0 %v360
    %623 = vmatmul.f32.gmra.mxu0 %v229
    %v624 = vpop.f32.mrf.mxu0
    %v625 = vadd.f32 %v605, %v624
    %626 = vdwg.mxu0
    %627 = vmatpush.msra.mxu0 %v484
    %628 = vmatpush.msra.mxu0 %v480
    %629 = vmatpush.msra.mxu0 %v476
    %630 = vmatpush.msra.mxu0 %v472
    %631 = vmatpush.msra.mxu0 %v468
    %632 = vmatpush.msra.mxu0 %v464
    %633 = vmatpush.msra.mxu0 %v460
    %634 = vmatpush.msra.mxu0 %v456
    %635 = vmatpush.msra.mxu0 %v452
    %636 = vmatpush.msra.mxu0 %v448
    %637 = vmatpush.msra.mxu0 %v444
    %638 = vmatpush.msra.mxu0 %v440
    %639 = vmatpush.msra.mxu0 %v436
    %640 = vmatpush.msra.mxu0 %v432
    %641 = vmatpush.msra.mxu0 %v428
    %642 = vmatpush.msra.mxu0 %v424
    %643 = vmatmul.f32.gmra.mxu0 %v230
    %v644 = vpop.f32.mrf.mxu0
    %v645 = vadd.f32 %v625, %v644
    %646 = vdwg.mxu0
    %647 = vmatpush.msra.mxu0 %v293
    %648 = vmatpush.msra.mxu0 %v289
    %649 = vmatpush.msra.mxu0 %v285
    %650 = vmatpush.msra.mxu0 %v281
    %651 = vmatpush.msra.mxu0 %v277
    %652 = vmatpush.msra.mxu0 %v273
    %653 = vmatpush.msra.mxu0 %v269
    %654 = vmatpush.msra.mxu0 %v265
    %655 = vmatpush.msra.mxu0 %v261
    %656 = vmatpush.msra.mxu0 %v257
    %657 = vmatpush.msra.mxu0 %v253
    %658 = vmatpush.msra.mxu0 %v249
    %659 = vmatpush.msra.mxu0 %v245
    %660 = vmatpush.msra.mxu0 %v241
    %661 = vmatpush.msra.mxu0 %v237
    %662 = vmatpush.msra.mxu0 %v233
    %663 = vmatmul.f32.gmra.mxu0 %v227
    %v664 = vpop.f32.mrf.mxu0
    %v665 = vadd.f32 0.0, %v664
    %666 = vdwg.mxu0
    %667 = vmatpush.msra.mxu0 %v357
    %668 = vmatpush.msra.mxu0 %v353
    %669 = vmatpush.msra.mxu0 %v349
    %670 = vmatpush.msra.mxu0 %v345
    %671 = vmatpush.msra.mxu0 %v341
    %672 = vmatpush.msra.mxu0 %v337
    %673 = vmatpush.msra.mxu0 %v333
    %674 = vmatpush.msra.mxu0 %v329
    %675 = vmatpush.msra.mxu0 %v325
    %676 = vmatpush.msra.mxu0 %v321
    %677 = vmatpush.msra.mxu0 %v317
    %678 = vmatpush.msra.mxu0 %v313
    %679 = vmatpush.msra.mxu0 %v309
    %680 = vmatpush.msra.mxu0 %v305
    %681 = vmatpush.msra.mxu0 %v301
    %682 = vmatpush.msra.mxu0 %v297
    %683 = vmatmul.f32.gmra.mxu0 %v228
    %v684 = vpop.f32.mrf.mxu0
    %v685 = vadd.f32 %v665, %v684
    %686 = vdwg.mxu0
    %687 = vmatpush.msra.mxu0 %v421
    %688 = vmatpush.msra.mxu0 %v417
    %689 = vmatpush.msra.mxu0 %v413
    %690 = vmatpush.msra.mxu0 %v409
    %691 = vmatpush.msra.mxu0 %v405
    %692 = vmatpush.msra.mxu0 %v401
    %693 = vmatpush.msra.mxu0 %v397
    %694 = vmatpush.msra.mxu0 %v393
    %695 = vmatpush.msra.mxu0 %v389
    %696 = vmatpush.msra.mxu0 %v385
    %697 = vmatpush.msra.mxu0 %v381
    %698 = vmatpush.msra.mxu0 %v377
    %699 = vmatpush.msra.mxu0 %v373
    %700 = vmatpush.msra.mxu0 %v369
    %701 = vmatpush.msra.mxu0 %v365
    %702 = vmatpush.msra.mxu0 %v361
    %703 = vmatmul.f32.gmra.mxu0 %v229
    %v704 = vpop.f32.mrf.mxu0
    %v705 = vadd.f32 %v685, %v704
    %706 = vdwg.mxu0
    %707 = vmatpush.msra.mxu0 %v485
    %708 = vmatpush.msra.mxu0 %v481
    %709 = vmatpush.msra.mxu0 %v477
    %710 = vmatpush.msra.mxu0 %v473
    %711 = vmatpush.msra.mxu0 %v469
    %712 = vmatpush.msra.mxu0 %v465
    %713 = vmatpush.msra.mxu0 %v461
    %714 = vmatpush.msra.mxu0 %v457
    %715 = vmatpush.msra.mxu0 %v453
    %716 = vmatpush.msra.mxu0 %v449
    %717 = vmatpush.msra.mxu0 %v445
    %718 = vmatpush.msra.mxu0 %v441
    %719 = vmatpush.msra.mxu0 %v437
    %720 = vmatpush.msra.mxu0 %v433
    %721 = vmatpush.msra.mxu0 %v429
    %722 = vmatpush.msra.mxu0 %v425
    %723 = vmatmul.f32.gmra.mxu0 %v230
    %v724 = vpop.f32.mrf.mxu0
    %v725 = vadd.f32 %v705, %v724
    %726 = vdwg.mxu0
    %727 = vmatpush.msra.mxu0 %v294
    %728 = vmatpush.msra.mxu0 %v290
    %729 = vmatpush.msra.mxu0 %v286
    %730 = vmatpush.msra.mxu0 %v282
    %731 = vmatpush.msra.mxu0 %v278
    %732 = vmatpush.msra.mxu0 %v274
    %733 = vmatpush.msra.mxu0 %v270
    %734 = vmatpush.msra.mxu0 %v266
    %735 = vmatpush.msra.mxu0 %v262
    %736 = vmatpush.msra.mxu0 %v258
    %737 = vmatpush.msra.mxu0 %v254
    %738 = vmatpush.msra.mxu0 %v250
    %739 = vmatpush.msra.mxu0 %v246
    %740 = vmatpush.msra.mxu0 %v242
    %741 = vmatpush.msra.mxu0 %v238
    %742 = vmatpush.msra.mxu0 %v234
    %743 = vmatmul.f32.gmra.mxu0 %v227
    %v744 = vpop.f32.mrf.mxu0
    %v745 = vadd.f32 0.0, %v744
    %746 = vdwg.mxu0
    %747 = vmatpush.msra.mxu0 %v358
    %748 = vmatpush.msra.mxu0 %v354
    %749 = vmatpush.msra.mxu0 %v350
    %750 = vmatpush.msra.mxu0 %v346
    %751 = vmatpush.msra.mxu0 %v342
    %752 = vmatpush.msra.mxu0 %v338
    %753 = vmatpush.msra.mxu0 %v334
    %754 = vmatpush.msra.mxu0 %v330
    %755 = vmatpush.msra.mxu0 %v326
    %756 = vmatpush.msra.mxu0 %v322
    %757 = vmatpush.msra.mxu0 %v318
    %758 = vmatpush.msra.mxu0 %v314
    %759 = vmatpush.msra.mxu0 %v310
    %760 = vmatpush.msra.mxu0 %v306
    %761 = vmatpush.msra.mxu0 %v302
    %762 = vmatpush.msra.mxu0 %v298
    %763 = vmatmul.f32.gmra.mxu0 %v228
    %v764 = vpop.f32.mrf.mxu0
    %v765 = vadd.f32 %v745, %v764
    %766 = vdwg.mxu0
    %767 = vmatpush.msra.mxu0 %v422
    %768 = vmatpush.msra.mxu0 %v418
    %769 = vmatpush.msra.mxu0 %v414
    %770 = vmatpush.msra.mxu0 %v410
    %771 = vmatpush.msra.mxu0 %v406
    %772 = vmatpush.msra.mxu0 %v402
    %773 = vmatpush.msra.mxu0 %v398
    %774 = vmatpush.msra.mxu0 %v394
    %775 = vmatpush.msra.mxu0 %v390
    %776 = vmatpush.msra.mxu0 %v386
    %777 = vmatpush.msra.mxu0 %v382
    %778 = vmatpush.msra.mxu0 %v378
    %779 = vmatpush.msra.mxu0 %v374
    %780 = vmatpush.msra.mxu0 %v370
    %781 = vmatpush.msra.mxu0 %v366
    %782 = vmatpush.msra.mxu0 %v362
    %783 = vmatmul.f32.gmra.mxu0 %v229
    %v784 = vpop.f32.mrf.mxu0
    %v785 = vadd.f32 %v765, %v784
    %786 = vdwg.mxu0
    %787 = vmatpush.msra.mxu0 %v486
    %788 = vmatpush.msra.mxu0 %v482
    %789 = vmatpush.msra.mxu0 %v478
    %790 = vmatpush.msra.mxu0 %v474
    %791 = vmatpush.msra.mxu0 %v470
    %792 = vmatpush.msra.mxu0 %v466
    %793 = vmatpush.msra.mxu0 %v462
    %794 = vmatpush.msra.mxu0 %v458
    %795 = vmatpush.msra.mxu0 %v454
    %796 = vmatpush.msra.mxu0 %v450
    %797 = vmatpush.msra.mxu0 %v446
    %798 = vmatpush.msra.mxu0 %v442
    %799 = vmatpush.msra.mxu0 %v438
    %800 = vmatpush.msra.mxu0 %v434
    %801 = vmatpush.msra.mxu0 %v430
    %802 = vmatpush.msra.mxu0 %v426
    %803 = vmatmul.f32.gmra.mxu0 %v230
    %v804 = vpop.f32.mrf.mxu0
    %v805 = vadd.f32 %v785, %v804
    %806 = vdwg.mxu0
    %v808 = vperm.slane %v81, 0
    %v809 = vperm.slane %v81, 1
    %v810 = vperm.slane %v81, 2
    %v811 = vperm.slane %v81, 3
    %v816 = vmul.f32 %v565, %v808
    %v817 = vmul.f32 %v645, %v809
    %v818 = vmul.f32 %v725, %v810
    %v819 = vmul.f32 %v805, %v811
    %v821 = vperm.slane %v83, 0
    %v822 = vperm.slane %v83, 1
    %v823 = vperm.slane %v83, 2
    %v824 = vperm.slane %v83, 3
    %v829 = vadd.f32 %v816, %v821
    %v830 = vadd.f32 %v817, %v822
    %v831 = vadd.f32 %v818, %v823
    %v832 = vadd.f32 %v819, %v824
    %v833 = vmax.f32 %v829, 0.0
    %v834 = vmax.f32 %v830, 0.0
    %v835 = vmax.f32 %v831, 0.0
    %v836 = vmax.f32 %v832, 0.0
    %v841 = vrot.slane %v834, 6
    %v842 = vrot.slane %v835, 4
    %v843 = vrot.slane %v836, 2
    %vm844 = vcmask 1041408
    %v845 = vsel %vm844, %v833, %v841
    %vm846 = vcmask 1045508
    %v847 = vsel %vm846, %v842, %v843
    %vm848 = vcmask 1043456
    %v849 = vsel %vm848, %v845, %v847
    %851 = vst [vmem:[#allocation10] sm:$0xff] %v849
    // Predicated region
    $region34: #{tpu_custom_call.1} parent=1 // pred_check
      _
    $region35: #{tpu_custom_call.1} parent=1 // pred_check_branch
      %853 = sbr.rel (0) target = $region37
    $region36: #{tpu_custom_call.1} parent=1 // pred_region
      %855 = vsyncadd [#allocation4], 0
      %s857 = sshll.u32 [#allocation10], 4
      %s858 = int_to_ptr.vmem [resolvable:$true] %s857
      %s859 = sshll.u32 %s4, 4
      %s860 = int_to_ptr.hbm [resolvable:$true] %s859
      %862 = dma.vmem_to_hbm [thread:$0]  %s858, 128, %s860, [#allocation4]
    $region37: #{tpu_custom_call.1} parent=1 // pred_fallthru
      _
    // Predicated region
    $region38: #{tpu_custom_call.1} parent=1 // pred_check
      _
    $region39: #{tpu_custom_call.1} parent=1 // pred_check_branch
      %864 = sbr.rel (0) target = $region41
    $region40: #{tpu_custom_call.1} parent=1 // pred_region
      %866 = dma.done [#allocation4], 128
    $region41: #{tpu_custom_call.1} parent=1 // pred_fallthru
      _
    %867 = vsyncpa [#allocation3], 1
    %868 = vsyncpa [#allocation6], 1
    %869 = vsyncpa [#allocation9], 1
    %870 = vsyncpa [#allocation4], 1

</llo_original>
